<compile_context>
chip_gen: v6e
topology: v6e:2x2x1
jax: 0.10.0
libtpu: 0.0.40
codegen_flags: <defaults>
</compile_context>

<pallas_src>
import functools

import jax
import jax.numpy as jnp
from jax import lax
from jax.experimental import pallas as pl
from jax.experimental.pallas import tpu as pltpu


# Packed per-sample statistics (columns of the (bz, 8) accumulator / output):
#   0: m1 (running max, embed scores)   3: m2 (running max, logit scores)
#   1: se1 (running sum exp)            4: se2 (running sum exp)
#   2: a1  (running sum wm*s1)          5: a2  (running sum wm*s2)
#   6: wsum (running sum wm)            7: msum (running mask count)
_N_STATS = 8


def _compatible_loss_kernel(lhs_ref, queue_ref, labels_ref, qlabels_ref,
                            out_ref, stats_ref, *, bz):
    q_step = pl.program_id(1)
    last = pl.num_programs(1) - 1

    @pl.when(q_step == 0)
    def _init():
        col = lax.broadcasted_iota(jnp.int32, stats_ref.shape, 1)
        stats_ref[...] = jnp.where(
            (col == 0) | (col == 3),
            jnp.full(stats_ref.shape, -jnp.inf, jnp.float32),
            jnp.zeros(stats_ref.shape, jnp.float32))

    # Single block-diagonal MXU pass over the combined (F+C, TQ) queue tile:
    #   rows [0:bz)    -> s1  = normalized new_embeds (1/temp folded) scores
    #   rows [bz:2bz)  -> sim = old_embeds similarities (for the weighting)
    #   rows [2bz:3bz) -> s2  = new_logits (1/temp folded) scores
    res = jnp.dot(lhs_ref[...], queue_ref[...],
                  preferred_element_type=jnp.float32)          # (3*bz, TQ) f32
    s1 = res[:bz, :]
    sim = res[bz:2 * bz, :]
    s2 = res[2 * bz:, :]

    # mask[i, q] = (queue_labels[q] == labels[i]).  wm carries 2x the true
    # weight ((sim+1) instead of 0.5*(sim+1)); the 0.5 is folded into the
    # wrapper-side finalize.  where() instead of cast+multiply.
    eq = qlabels_ref[...] == labels_ref[...]                   # (bz, TQ) bool
    wm = jnp.where(eq, sim + 1.0, 0.0)

    st = stats_ref[...]                                        # (bz, 8) f32

    def acc(s, m, se, a):
        # Exact term sum_q wm*s (no rescaling needed); online logsumexp for s.
        a = a + jnp.sum(wm * s, axis=1, keepdims=True)
        m_new = jnp.maximum(m, jnp.max(s, axis=1, keepdims=True))
        se = (se * jnp.exp(m - m_new)
              + jnp.sum(jnp.exp(s - m_new), axis=1, keepdims=True))
        return m_new, se, a

    m1, se1, a1 = acc(s1, st[:, 0:1], st[:, 1:2], st[:, 2:3])
    m2, se2, a2 = acc(s2, st[:, 3:4], st[:, 4:5], st[:, 5:6])
    wsum = st[:, 6:7] + jnp.sum(wm, axis=1, keepdims=True)
    msum = st[:, 7:8] + jnp.sum(eq.astype(jnp.float32), axis=1, keepdims=True)

    stats_ref[:, 0:1] = m1
    stats_ref[:, 1:2] = se1
    stats_ref[:, 2:3] = a1
    stats_ref[:, 3:4] = m2
    stats_ref[:, 4:5] = se2
    stats_ref[:, 5:6] = a2
    stats_ref[:, 6:7] = wsum
    stats_ref[:, 7:8] = msum

    @pl.when(q_step == last)
    def _finalize():
        # Per-core packed partial statistics; merged (logsumexp-combined) in
        # the wrapper so the Q axis can be sharded across TensorCores.
        out_ref[...] = stats_ref[...]


def _vmem_capacity_bytes():
    """Generation-aware VMEM capacity (v5e/v6e 128 MiB, v7x 64 MiB)."""
    try:
        return int(pltpu.get_tpu_info().vmem_capacity_bytes)
    except Exception:
        return 64 * 2**20   # conservative fallback (v7x per-core VMEM)


def _pick_q_tile(q_split, col_bytes, interm_per_col, vmem_cap,
                 target_step_bytes=4 << 20, min_steps=4):
    """Largest q tile (multiple of 128 dividing q_split) such that:
       * streamed queue bytes per step stay <= target_step_bytes,
       * at least min_steps grid steps remain (overlap + overhead amortization),
       * 3 queue buffers + the (bz, q_tile) f32 intermediates fit ~60% of VMEM.
    """
    if q_split <= 128 or q_split % 128:
        return q_split
    budget = int(0.6 * vmem_cap)
    best = 128
    for tq in range(128, q_split + 1, 128):
        if q_split % tq:
            continue
        if 3 * tq * col_bytes + tq * interm_per_col > budget:
            break
        if tq * col_bytes <= target_step_bytes and (q_split // tq) >= min_steps:
            best = tq
    return best


def compatible_learning_loss_pallas(new_embeds, old_embeds, new_logits,
                                    queue_kc, queue_labels, labels, temp=1.0,
                                    q_tile=None, num_q_splits=2,
                                    compute_dtype=jnp.bfloat16):
    """Computes (l1_loss, l2_loss) on the (already rank-sliced) batch.

    queue_kc is the combined, transposed queue buffer of shape (F + C, Q) in
    compute_dtype: rows [0:F) = feat_queue.T, rows [F:F+C) = logit_queue.T.
    Keeping the registered buffer in this layout removes all per-call
    transpose/cast HBM traffic (the kernel streams it directly).
    """
    bz, F = new_embeds.shape
    C = new_logits.shape[1]
    K, Q = queue_kc.shape
    assert K == F + C, (K, F, C)
    assert bz % 8 == 0, f"batch per rank must be a multiple of 8, got {bz}"
    assert queue_kc.dtype == jnp.dtype(compute_dtype)

    inv_temp = float(1.0 / temp)

    # f32 L2-normalize (== F.normalize(x, p=2, dim=1, eps=1e-12)).  1/temp is
    # folded into the tiny (bz, *) operands once here, so the kernel needs no
    # per-tile rescaling of s1/s2.
    ne = new_embeds.astype(jnp.float32)
    nrm = jnp.sqrt(jnp.sum(ne * ne, axis=1, keepdims=True))
    ne = (ne / jnp.maximum(nrm, 1e-12)) * inv_temp

    # Block-diagonal LHS (3*bz, F+C): one MXU contraction against the combined
    # queue tile yields s1, the weighting similarity, and s2 at once.
    lhs = jnp.zeros((3 * bz, K), jnp.float32)
    lhs = lhs.at[:bz, :F].set(ne)
    lhs = lhs.at[bz:2 * bz, :F].set(old_embeds.astype(jnp.float32))
    lhs = lhs.at[2 * bz:, F:].set(new_logits.astype(jnp.float32) * inv_temp)
    lhs = lhs.astype(compute_dtype)

    labels2d = labels.reshape(bz, 1).astype(jnp.int32)
    qlabels2d = queue_labels.reshape(1, Q).astype(jnp.int32)

    itemsize = jnp.dtype(compute_dtype).itemsize
    col_bytes = K * itemsize + 4          # queue column + its int32 label
    interm_per_col = 10 * bz * 4          # (bz/3bz, TQ)-sized f32 temporaries
    vmem_cap = _vmem_capacity_bytes()

    if Q % 128 != 0:
        num_q_splits, q_tile = 1, Q       # degenerate fallback: one full tile
    else:
        if num_q_splits < 1 or Q % (num_q_splits * 128) != 0:
            num_q_splits = 1
        if q_tile is None:
            q_tile = _pick_q_tile(Q // num_q_splits, col_bytes, interm_per_col,
                                  vmem_cap)
    q_split = Q // num_q_splits
    assert q_split % q_tile == 0, (Q, num_q_splits, q_tile)
    steps_per_split = q_split // q_tile

    step_bytes = q_tile * col_bytes
    # Deeper buffering only pays once steps reach MiB scale (hides DMA start
    # latency at tile boundaries); default double-buffering otherwise.
    n_buf = 3 if step_bytes >= (1 << 20) else 2
    queue_spec_kwargs = {"pipeline_mode": pl.Buffered(n_buf)} if n_buf > 2 else {}

    resident_bytes = (3 * bz * K * itemsize + bz * 4 + Q * 4
                      + num_q_splits * bz * _N_STATS * 4 + 8 * 128 * 4)
    needed = n_buf * step_bytes + q_tile * interm_per_col + resident_bytes
    vmem_limit = int(min(max(needed + (2 << 20), 8 << 20), vmem_cap - (2 << 20)))

    cost = pl.CostEstimate(
        flops=2 * Q * 3 * bz * K,
        transcendentals=2 * bz * Q,
        bytes_accessed=(Q * col_bytes + 3 * bz * K * itemsize + bz * 4
                        + num_q_splits * bz * _N_STATS * 4),
    )

    def queue_idx(c, q, s=steps_per_split):
        return (0, c * s + q)

    kernel = functools.partial(_compatible_loss_kernel, bz=bz)
    stats = pl.pallas_call(
        kernel,
        out_shape=jax.ShapeDtypeStruct((num_q_splits, bz, _N_STATS), jnp.float32),
        grid_spec=pltpu.PrefetchScalarGridSpec(
            num_scalar_prefetch=0,
            grid=(num_q_splits, steps_per_split),
            in_specs=[
                pl.BlockSpec((3 * bz, K), lambda c, q: (0, 0)),   # fused LHS
                pl.BlockSpec((K, q_tile), queue_idx,              # queue tile
                             **queue_spec_kwargs),
                pl.BlockSpec((bz, 1), lambda c, q: (0, 0)),       # labels
                pl.BlockSpec((1, q_tile), queue_idx),             # queue labels
            ],
            out_specs=pl.BlockSpec((None, bz, _N_STATS), lambda c, q: (c, 0, 0)),
            scratch_shapes=[pltpu.VMEM((bz, _N_STATS), jnp.float32)],
        ),
        compiler_params=pltpu.CompilerParams(
            dimension_semantics=("parallel", "arbitrary"),   # Q split x reduction
            vmem_limit_bytes=vmem_limit),
        cost_estimate=cost,
    )(lhs, queue_kc, labels2d, qlabels2d)

    # Combine per-core partial statistics (tiny (num_q_splits, bz, 8) tensor).
    m1, se1, a1 = stats[..., 0], stats[..., 1], stats[..., 2]
    m2, se2, a2 = stats[..., 3], stats[..., 4], stats[..., 5]
    wsum = jnp.sum(stats[..., 6], axis=0)
    msum = jnp.sum(stats[..., 7], axis=0)

    def merged_lse(m, se):
        m_max = jnp.max(m, axis=0)
        return m_max + jnp.log(jnp.sum(se * jnp.exp(m - m_max), axis=0))

    lse1, lse2 = merged_lse(m1, se1), merged_lse(m2, se2)
    a1, a2 = jnp.sum(a1, axis=0), jnp.sum(a2, axis=0)

    # Guard mask_sum == 0 (queue labels init to -1): contribution is 0 instead
    # of NaN (explicit fix vs. the PyTorch original's 0/0 hazard).  The 0.5 of
    # the weight (folded out of the kernel) is applied here once.
    inv_cnt = 1.0 / jnp.maximum(msum, 1.0)
    loss1 = -jnp.mean(0.5 * (a1 - wsum * lse1) * inv_cnt)
    loss2 = -jnp.mean(0.5 * (a2 - wsum * lse2) * inv_cnt)
    return loss1, loss2


def _reference_loss(new_embeds, old_embeds, new_logits, feat_queue, logit_queue,
                    queue_labels, labels, temp=1.0, matmul_dtype=None):
    """Plain-JAX reference mirroring the PyTorch forward (post queue update).
    matmul_dtype, if set, mirrors the kernel numerics: 1/temp folded into the
    LHS and matmul operands rounded to that dtype (f32 accumulation)."""
    inv_temp = 1.0 / temp
    ne = new_embeds.astype(jnp.float32)
    nrm = jnp.sqrt(jnp.sum(ne * ne, axis=1, keepdims=True))
    ne = ne / jnp.maximum(nrm, 1e-12)
    oe = old_embeds.astype(jnp.float32)
    nl = new_logits.astype(jnp.float32)
    fq = feat_queue.astype(jnp.float32)
    lq = logit_queue.astype(jnp.float32)
    if matmul_dtype is not None:
        cast = lambda x: x.astype(matmul_dtype).astype(jnp.float32)
        ne, nl = cast(ne * inv_temp), cast(nl * inv_temp)
        oe, fq, lq = cast(oe), cast(fq), cast(lq)
        s1, s2 = ne @ fq.T, nl @ lq.T
    else:
        s1, s2 = (ne @ fq.T) * inv_temp, (nl @ lq.T) * inv_temp

    mask = (queue_labels[None, :] == labels[:, None]).astype(jnp.float32)
    weight = 0.5 * (oe @ fq.T + 1.0)
    msum = jnp.maximum(mask.sum(1), 1.0)

    def one_loss(scores):
        scores = scores - scores.max(1, keepdims=True)
        log_prob = scores - jnp.log(jnp.exp(scores).sum(1, keepdims=True))
        return -jnp.mean((mask * log_prob * weight).sum(1) / msum)

    return one_loss(s1), one_loss(s2)


if __name__ == "__main__":
    # Module hyper-parameters (small but grid-exercising shapes).
    num_features = 32
    num_classes = 16
    queue_size = 1024
    temp = 1.0
    world_size, rank, header = 1, 0, 0          # simulated distributed setup
    compute_dtype = jnp.bfloat16                # streamed matmul dtype

    N = 8                                       # global batch size
    bz = N // world_size

    key = jax.random.PRNGKey(0)
    k1, k2, k3, k4, k5 = jax.random.split(key, 5)
    old_embeds = jax.random.normal(k1, (N, num_features), dtype=jnp.float32)
    old_logits = jax.random.normal(k2, (N, num_classes), dtype=jnp.float32)
    new_embeds = jax.random.normal(k3, (N, num_features), dtype=jnp.float32)
    new_logits = jax.random.normal(k4, (N, num_classes), dtype=jnp.float32)
    labels = jax.random.randint(k5, (N,), 0, num_classes, dtype=jnp.int32)

    # Registered buffers.  The queues are kept transposed and concatenated as a
    # single (F + C, Q) buffer in the compute dtype so the kernel streams them
    # directly from HBM with no per-call transpose/cast traffic.
    queue_kc = jnp.zeros((num_features + num_classes, queue_size),
                         dtype=compute_dtype)
    queue_labels = -jnp.ones((queue_size,), dtype=jnp.int32)

    # --- glue: circular-queue enqueue of the batch (header=0, N < queue_size) -
    # TODO(synk): the original mutates nn.Module buffers in-place; here the
    # updated buffers are returned functionally.
    enqueue = jnp.concatenate([old_embeds.T, old_logits.T],
                              axis=0).astype(compute_dtype)
    queue_kc = lax.dynamic_update_slice(queue_kc, enqueue, (0, header))
    queue_labels = lax.dynamic_update_slice(queue_labels, labels, (header,))

    # --- glue: rank slicing (world_size=1 -> whole batch) ---------------------
    sl = slice(rank * bz, (rank + 1) * bz)
    ne_r, oe_r = new_embeds[sl], old_embeds[sl]
    nl_r, lab_r = new_logits[sl], labels[sl]

    l1, l2 = compatible_learning_loss_pallas(
        ne_r, oe_r, nl_r, queue_kc, queue_labels, lab_r, temp=temp,
        compute_dtype=compute_dtype)
    jax.block_until_ready((l1, l2))

    # (Q, F)/(Q, C) f32 views of the stored queue for the references.
    feat_q = queue_kc[:num_features].T.astype(jnp.float32)
    logit_q = queue_kc[num_features:].T.astype(jnp.float32)

    # Matched-precision reference (bf16 matmul operands, f32 everything else).
    l1_ref, l2_ref = _reference_loss(ne_r, oe_r, nl_r, feat_q, logit_q,
                                     queue_labels, lab_r, temp,
                                     matmul_dtype=compute_dtype)
    assert jnp.allclose(l1, l1_ref, rtol=1e-4, atol=1e-4), (l1, l1_ref)
    assert jnp.allclose(l2, l2_ref, rtol=1e-4, atol=1e-4), (l2, l2_ref)

    # Full-f32 semantic sanity check (loose tolerance covers bf16 rounding).
    l1_f32, l2_f32 = _reference_loss(ne_r, oe_r, nl_r, feat_q, logit_q,
                                     queue_labels, lab_r, temp)
    assert jnp.allclose(l1, l1_f32, rtol=5e-2, atol=1.0), (l1, l1_f32)
    assert jnp.allclose(l2, l2_f32, rtol=5e-2, atol=1.0), (l2, l2_f32)

    print("KERNEL_OK")
</pallas_src>

<mosaic_0001>
module attributes {stable_mosaic.version = 11 : i64} {
  func.func @_compatible_loss_kernel(%arg0: i32, %arg1: i32, %arg2: memref<24x48xbf16, #tpu.memory_space<vmem>>, %arg3: memref<48x128xbf16, #tpu.memory_space<vmem>>, %arg4: memref<8x1xi32, #tpu.memory_space<vmem>>, %arg5: memref<1x128xi32, #tpu.memory_space<vmem>>, %arg6: memref<1x8x8xf32, #tpu.memory_space<vmem>>, %arg7: memref<8x8xf32, #tpu.memory_space<vmem>>) attributes {dimension_semantics = [#tpu.dimension_semantics<parallel>, #tpu.dimension_semantics<arbitrary>], iteration_bounds = array<i64: 2, 4>, scalar_prefetch = 0 : i64, scratch_operands = 1 : i64, tpu.core_type = #tpu.core_type<tc>, window_params = [{pipeline_mode = #tpu.pipeline_mode<synchronous>, transform_indices = @transform_0, window_bounds = array<i64: 24, 48>}, {transform_indices = @transform_1, window_bounds = array<i64: 48, 128>}, {pipeline_mode = #tpu.pipeline_mode<synchronous>, transform_indices = @transform_2, window_bounds = array<i64: 8, 1>}, {transform_indices = @transform_3, window_bounds = array<i64: 1, 128>}, {transform_indices = @transform_4, window_bounds = array<i64: 1, 8, 8>}]} {
    %c0_i32 = arith.constant 0 : i32
    %0 = arith.cmpi eq, %arg1, %c0_i32 : i32
    %1 = arith.extui %0 : i1 to i32
    %c0_i32_0 = arith.constant 0 : i32
    %2 = arith.cmpi ne, %1, %c0_i32_0 : i32
    scf.if %2 {
      %78 = tpu.iota {dimensions = array<i32: 1>} : vector<8x8xi32>
      %c0_i32_30 = arith.constant 0 : i32
      %79 = vector.broadcast %c0_i32_30 : i32 to vector<8x8xi32>
      %80 = arith.cmpi eq, %78, %79 : vector<8x8xi32>
      %c3_i32_31 = arith.constant 3 : i32
      %81 = vector.broadcast %c3_i32_31 : i32 to vector<8x8xi32>
      %82 = arith.cmpi eq, %78, %81 : vector<8x8xi32>
      %83 = arith.ori %80, %82 : vector<8x8xi1>
      %cst_32 = arith.constant 0xFF800000 : f32
      %84 = vector.broadcast %cst_32 : f32 to vector<8x8xf32>
      %cst_33 = arith.constant 0.000000e+00 : f32
      %85 = vector.broadcast %cst_33 : f32 to vector<8x8xf32>
      %86 = arith.select %83, %84, %85 : vector<8x8xi1>, vector<8x8xf32>
      %c0_34 = arith.constant 0 : index
      %c0_35 = arith.constant 0 : index
      %87 = vector.load %arg7[%c0_34, %c0_35] : memref<8x8xf32, #tpu.memory_space<vmem>>, vector<8x8xf32>
      tpu.vector_store %arg7[%c0_34, %c0_35], %86 {strides = array<i32>} : memref<8x8xf32, #tpu.memory_space<vmem>>, vector<8x8xf32>,
    } else {
    }
    %c0 = arith.constant 0 : index
    %c0_1 = arith.constant 0 : index
    %3 = vector.load %arg2[%c0, %c0_1] : memref<24x48xbf16, #tpu.memory_space<vmem>>, vector<24x48xbf16>
    %c0_2 = arith.constant 0 : index
    %c0_3 = arith.constant 0 : index
    %4 = vector.load %arg3[%c0_2, %c0_3] : memref<48x128xbf16, #tpu.memory_space<vmem>>, vector<48x128xbf16>
    %cst = arith.constant dense<0.000000e+00> : vector<24x128xf32>
    %5 = tpu.matmul %3, %4, %cst {dimension_numbers = #tpu.dot_dimension_numbers<[1], [0], [0], [1], [0, 0, 1, 1], [], []>} : vector<24x48xbf16>, vector<48x128xbf16>, vector<24x128xf32> -> vector<24x128xf32>
    %6 = vector.extract_strided_slice %5 {offsets = [0, 0], sizes = [8, 128], strides = [1, 1]} : vector<24x128xf32> to vector<8x128xf32>
    %7 = vector.extract_strided_slice %5 {offsets = [8, 0], sizes = [8, 128], strides = [1, 1]} : vector<24x128xf32> to vector<8x128xf32>
    %8 = vector.extract_strided_slice %5 {offsets = [16, 0], sizes = [8, 128], strides = [1, 1]} : vector<24x128xf32> to vector<8x128xf32>
    %c0_4 = arith.constant 0 : index
    %c0_5 = arith.constant 0 : index
    %9 = vector.load %arg5[%c0_4, %c0_5] : memref<1x128xi32, #tpu.memory_space<vmem>>, vector<1x128xi32>
    %c0_6 = arith.constant 0 : index
    %c0_7 = arith.constant 0 : index
    %10 = vector.load %arg4[%c0_6, %c0_7] : memref<8x1xi32, #tpu.memory_space<vmem>>, vector<8x1xi32>
    %11 = vector.broadcast %9 : vector<1x128xi32> to vector<8x128xi32>
    %12 = vector.broadcast %10 : vector<8x1xi32> to vector<8x128xi32>
    %13 = arith.cmpi eq, %11, %12 : vector<8x128xi32>
    %cst_8 = arith.constant 1.000000e+00 : f32
    %14 = vector.broadcast %cst_8 : f32 to vector<8x128xf32>
    %15 = arith.addf %7, %14 : vector<8x128xf32>
    %cst_9 = arith.constant 0.000000e+00 : f32
    %16 = vector.broadcast %cst_9 : f32 to vector<8x128xf32>
    %17 = arith.select %13, %15, %16 : vector<8x128xi1>, vector<8x128xf32>
    %c0_10 = arith.constant 0 : index
    %c0_11 = arith.constant 0 : index
    %18 = vector.load %arg7[%c0_10, %c0_11] : memref<8x8xf32, #tpu.memory_space<vmem>>, vector<8x8xf32>
    %19 = vector.extract_strided_slice %18 {offsets = [0, 0], sizes = [8, 1], strides = [1, 1]} : vector<8x8xf32> to vector<8x1xf32>
    %20 = vector.extract_strided_slice %18 {offsets = [0, 1], sizes = [8, 1], strides = [1, 1]} : vector<8x8xf32> to vector<8x1xf32>
    %21 = vector.extract_strided_slice %18 {offsets = [0, 2], sizes = [8, 1], strides = [1, 1]} : vector<8x8xf32> to vector<8x1xf32>
    %22 = arith.mulf %17, %6 : vector<8x128xf32>
    %cst_12 = arith.constant dense<0.000000e+00> : vector<8xf32>
    %23 = vector.multi_reduction <add>, %22, %cst_12 [1] : vector<8x128xf32> to vector<8xf32>
    %24 = vector.shape_cast %23 : vector<8xf32> to vector<8x1xf32>
    %25 = arith.addf %21, %24 : vector<8x1xf32>
    %cst_13 = arith.constant dense<0xFF800000> : vector<8xf32>
    %26 = vector.multi_reduction <maximumf>, %6, %cst_13 [1] : vector<8x128xf32> to vector<8xf32>
    %27 = vector.shape_cast %26 : vector<8xf32> to vector<8x1xf32>
    %28 = arith.maximumf %19, %27 : vector<8x1xf32>
    %29 = arith.subf %19, %28 : vector<8x1xf32>
    %30 = math.exp %29 : vector<8x1xf32>
    %31 = arith.mulf %20, %30 : vector<8x1xf32>
    %32 = vector.broadcast %28 : vector<8x1xf32> to vector<8x128xf32>
    %33 = arith.subf %6, %32 : vector<8x128xf32>
    %34 = math.exp %33 : vector<8x128xf32>
    %cst_14 = arith.constant dense<0.000000e+00> : vector<8xf32>
    %35 = vector.multi_reduction <add>, %34, %cst_14 [1] : vector<8x128xf32> to vector<8xf32>
    %36 = vector.shape_cast %35 : vector<8xf32> to vector<8x1xf32>
    %37 = arith.addf %31, %36 : vector<8x1xf32>
    %38 = vector.extract_strided_slice %18 {offsets = [0, 3], sizes = [8, 1], strides = [1, 1]} : vector<8x8xf32> to vector<8x1xf32>
    %39 = vector.extract_strided_slice %18 {offsets = [0, 4], sizes = [8, 1], strides = [1, 1]} : vector<8x8xf32> to vector<8x1xf32>
    %40 = vector.extract_strided_slice %18 {offsets = [0, 5], sizes = [8, 1], strides = [1, 1]} : vector<8x8xf32> to vector<8x1xf32>
    %41 = arith.mulf %17, %8 : vector<8x128xf32>
    %cst_15 = arith.constant dense<0.000000e+00> : vector<8xf32>
    %42 = vector.multi_reduction <add>, %41, %cst_15 [1] : vector<8x128xf32> to vector<8xf32>
    %43 = vector.shape_cast %42 : vector<8xf32> to vector<8x1xf32>
    %44 = arith.addf %40, %43 : vector<8x1xf32>
    %cst_16 = arith.constant dense<0xFF800000> : vector<8xf32>
    %45 = vector.multi_reduction <maximumf>, %8, %cst_16 [1] : vector<8x128xf32> to vector<8xf32>
    %46 = vector.shape_cast %45 : vector<8xf32> to vector<8x1xf32>
    %47 = arith.maximumf %38, %46 : vector<8x1xf32>
    %48 = arith.subf %38, %47 : vector<8x1xf32>
    %49 = math.exp %48 : vector<8x1xf32>
    %50 = arith.mulf %39, %49 : vector<8x1xf32>
    %51 = vector.broadcast %47 : vector<8x1xf32> to vector<8x128xf32>
    %52 = arith.subf %8, %51 : vector<8x128xf32>
    %53 = math.exp %52 : vector<8x128xf32>
    %cst_17 = arith.constant dense<0.000000e+00> : vector<8xf32>
    %54 = vector.multi_reduction <add>, %53, %cst_17 [1] : vector<8x128xf32> to vector<8xf32>
    %55 = vector.shape_cast %54 : vector<8xf32> to vector<8x1xf32>
    %56 = arith.addf %50, %55 : vector<8x1xf32>
    %57 = vector.extract_strided_slice %18 {offsets = [0, 6], sizes = [8, 1], strides = [1, 1]} : vector<8x8xf32> to vector<8x1xf32>
    %cst_18 = arith.constant dense<0.000000e+00> : vector<8xf32>
    %58 = vector.multi_reduction <add>, %17, %cst_18 [1] : vector<8x128xf32> to vector<8xf32>
    %59 = vector.shape_cast %58 : vector<8xf32> to vector<8x1xf32>
    %60 = arith.addf %57, %59 : vector<8x1xf32>
    %61 = vector.extract_strided_slice %18 {offsets = [0, 7], sizes = [8, 1], strides = [1, 1]} : vector<8x8xf32> to vector<8x1xf32>
    %62 = arith.extui %13 : vector<8x128xi1> to vector<8x128xi32>
    %63 = arith.sitofp %62 : vector<8x128xi32> to vector<8x128xf32>
    %cst_19 = arith.constant dense<0.000000e+00> : vector<8xf32>
    %64 = vector.multi_reduction <add>, %63, %cst_19 [1] : vector<8x128xf32> to vector<8xf32>
    %65 = vector.shape_cast %64 : vector<8xf32> to vector<8x1xf32>
    %66 = arith.addf %61, %65 : vector<8x1xf32>
    %c0_20 = arith.constant 0 : index
    %c0_21 = arith.constant 0 : index
    %67 = vector.load %arg7[%c0_20, %c0_21] : memref<8x8xf32, #tpu.memory_space<vmem>>, vector<8x1xf32>
    tpu.vector_store %arg7[%c0_20, %c0_21], %28 {strides = array<i32>} : memref<8x8xf32, #tpu.memory_space<vmem>>, vector<8x1xf32>,
    %c0_22 = arith.constant 0 : index
    %c1 = arith.constant 1 : index
    %68 = vector.load %arg7[%c0_22, %c1] : memref<8x8xf32, #tpu.memory_space<vmem>>, vector<8x1xf32>
    tpu.vector_store %arg7[%c0_22, %c1], %37 {strides = array<i32>} : memref<8x8xf32, #tpu.memory_space<vmem>>, vector<8x1xf32>,
    %c0_23 = arith.constant 0 : index
    %c2 = arith.constant 2 : index
    %69 = vector.load %arg7[%c0_23, %c2] : memref<8x8xf32, #tpu.memory_space<vmem>>, vector<8x1xf32>
    tpu.vector_store %arg7[%c0_23, %c2], %25 {strides = array<i32>} : memref<8x8xf32, #tpu.memory_space<vmem>>, vector<8x1xf32>,
    %c0_24 = arith.constant 0 : index
    %c3 = arith.constant 3 : index
    %70 = vector.load %arg7[%c0_24, %c3] : memref<8x8xf32, #tpu.memory_space<vmem>>, vector<8x1xf32>
    tpu.vector_store %arg7[%c0_24, %c3], %47 {strides = array<i32>} : memref<8x8xf32, #tpu.memory_space<vmem>>, vector<8x1xf32>,
    %c0_25 = arith.constant 0 : index
    %c4 = arith.constant 4 : index
    %71 = vector.load %arg7[%c0_25, %c4] : memref<8x8xf32, #tpu.memory_space<vmem>>, vector<8x1xf32>
    tpu.vector_store %arg7[%c0_25, %c4], %56 {strides = array<i32>} : memref<8x8xf32, #tpu.memory_space<vmem>>, vector<8x1xf32>,
    %c0_26 = arith.constant 0 : index
    %c5 = arith.constant 5 : index
    %72 = vector.load %arg7[%c0_26, %c5] : memref<8x8xf32, #tpu.memory_space<vmem>>, vector<8x1xf32>
    tpu.vector_store %arg7[%c0_26, %c5], %44 {strides = array<i32>} : memref<8x8xf32, #tpu.memory_space<vmem>>, vector<8x1xf32>,
    %c0_27 = arith.constant 0 : index
    %c6 = arith.constant 6 : index
    %73 = vector.load %arg7[%c0_27, %c6] : memref<8x8xf32, #tpu.memory_space<vmem>>, vector<8x1xf32>
    tpu.vector_store %arg7[%c0_27, %c6], %60 {strides = array<i32>} : memref<8x8xf32, #tpu.memory_space<vmem>>, vector<8x1xf32>,
    %c0_28 = arith.constant 0 : index
    %c7 = arith.constant 7 : index
    %74 = vector.load %arg7[%c0_28, %c7] : memref<8x8xf32, #tpu.memory_space<vmem>>, vector<8x1xf32>
    tpu.vector_store %arg7[%c0_28, %c7], %66 {strides = array<i32>} : memref<8x8xf32, #tpu.memory_space<vmem>>, vector<8x1xf32>,
    %c3_i32 = arith.constant 3 : i32
    %75 = arith.cmpi eq, %arg1, %c3_i32 : i32
    %76 = arith.extui %75 : i1 to i32
    %c0_i32_29 = arith.constant 0 : i32
    %77 = arith.cmpi ne, %76, %c0_i32_29 : i32
    scf.if %77 {
      %c0_30 = arith.constant 0 : index
      %c0_31 = arith.constant 0 : index
      %78 = vector.load %arg7[%c0_30, %c0_31] : memref<8x8xf32, #tpu.memory_space<vmem>>, vector<8x8xf32>
      %c0_32 = arith.constant 0 : index
      %c0_33 = arith.constant 0 : index
      %c0_34 = arith.constant 0 : index
      %79 = vector.load %arg6[%c0_32, %c0_33, %c0_34] : memref<1x8x8xf32, #tpu.memory_space<vmem>>, vector<1x8x8xf32>
      %80 = vector.shape_cast %79 : vector<1x8x8xf32> to vector<8x8xf32>
      %81 = vector.shape_cast %78 : vector<8x8xf32> to vector<1x8x8xf32>
      tpu.vector_store %arg6[%c0_32, %c0_33, %c0_34], %81 {strides = array<i32>} : memref<1x8x8xf32, #tpu.memory_space<vmem>>, vector<1x8x8xf32>,
    } else {
    }
    return
  }
  func.func @transform_0(%arg0: i32, %arg1: i32) -> (i32, i32) {
    %c0_i32 = arith.constant 0 : i32
    %c0_i32_0 = arith.constant 0 : i32
    %c0_i32_1 = arith.constant 0 : i32
    return %c0_i32, %c0_i32_0 : i32, i32
  }
  func.func @transform_1(%arg0: i32, %arg1: i32) -> (i32, i32) {
    %c4_i32 = arith.constant 4 : i32
    %0 = arith.muli %arg0, %c4_i32 : i32
    %1 = arith.addi %0, %arg1 : i32
    %c0_i32 = arith.constant 0 : i32
    %c0_i32_0 = arith.constant 0 : i32
    return %c0_i32, %1 : i32, i32
  }
  func.func @transform_2(%arg0: i32, %arg1: i32) -> (i32, i32) {
    %c0_i32 = arith.constant 0 : i32
    %c0_i32_0 = arith.constant 0 : i32
    %c0_i32_1 = arith.constant 0 : i32
    return %c0_i32, %c0_i32_0 : i32, i32
  }
  func.func @transform_3(%arg0: i32, %arg1: i32) -> (i32, i32) {
    %c4_i32 = arith.constant 4 : i32
    %0 = arith.muli %arg0, %c4_i32 : i32
    %1 = arith.addi %0, %arg1 : i32
    %c0_i32 = arith.constant 0 : i32
    %c0_i32_0 = arith.constant 0 : i32
    return %c0_i32, %1 : i32, i32
  }
  func.func @transform_4(%arg0: i32, %arg1: i32) -> (i32, i32, i32) {
    %c0_i32 = arith.constant 0 : i32
    %c0_i32_0 = arith.constant 0 : i32
    %c0_i32_1 = arith.constant 0 : i32
    return %arg0, %c0_i32, %c0_i32_0 : i32, i32, i32
  }
}

</mosaic_0001>

<llo_original>
// kernel: tpu_custom_call.1
$region0: #{tpu_custom_call.1}
  #allocation0 [shape = 'u32[]', space=smem, size = 0x4, offset = 0x4, fixed_abs, tag = 'smem constant byte address 0x4 - core index']
  #allocation1 [shape = 'u32[144,128]{1,0:T(1,128)}', space=vmem, size = 0x12000, scoped, tag = 'internal scratch']
  #allocation2 [shape = 'f32[8,8]{1,0:T(8,128)}', space=vmem, size = 0x1000, scoped, tag = 'scratch operand']
  %s0 = inlined_call_operand.hbm [shape: bf16[24,48], index: 0, kind: input, shape index: {}]
  %s1 = inlined_call_operand.hbm [shape: bf16[48,1024], index: 1, kind: input, shape index: {}]
  %s2 = inlined_call_operand.vmem [shape: s32[8,1], index: 2, kind: input, shape index: {}]
  %s3 = inlined_call_operand.vmem [shape: s32[1,1024], index: 3, kind: input, shape index: {}]
  %s4 = inlined_call_operand.hbm [shape: f32[2,8,8], index: 4, kind: output, shape index: {}]
  %s5 = sld [smem:[#allocation0]]
  $region65: #{tpu_custom_call.1} parent=0
    _
  %s7 = ssub.s32 1, %s5
  %s8 = scalar_select 0, %s7, %s5
  $region1: #{tpu_custom_call.1} parent=0
    #allocation3 [shape = 'u8[6144]{0}', space=vmem, size = 0x1800, scoped, tag = 'input window, operand 0, single buffered']
    #allocation4 [shape = 's32[2]{0}', space=sflag, size = 0x8, scoped, tag = 'scoped memory for tpu_custom_call.1']
    #allocation5 [shape = 's32[2]{0}', space=sflag, size = 0x8, scoped, tag = 'scoped memory for tpu_custom_call.1']
    #allocation6 [shape = 'u8[24576]{0}', space=vmem, size = 0x6000, scoped, tag = 'input window, operand 1']
    #allocation7 [shape = 's32[2]{0}', space=sflag, size = 0x8, scoped, tag = 'scoped memory for tpu_custom_call.1']
    #allocation8 [shape = 'u8[8192]{0}', space=vmem, size = 0x2000, scoped, tag = 'output window, operand 0']
    %9 = vsyncpa [#allocation4], 0
    %10 = vsyncpa [#allocation7], 0
    %s11 = scalar_lea.sflag [#allocation7], 1
    %12 = vsyncpa %s11, 0
    %13 = vsyncpa [#allocation5], 0
    %s14 = scalar_lea.sflag [#allocation5], 1
    %15 = vsyncpa %s14, 0
    loop: start=0, step=1, limit=10
    $region2: #{tpu_custom_call.1} parent=1 // loop_pre_header
      _
    $region3: #{tpu_custom_call.1} parent=1 // loop_header
      %s17 = sphi 0, %s21
      %p18 = scmp.ge.s32.totalorder %s17, 10
      %s24 = sphi 0, %s36
      %s25 = sphi 0, %s32
      %s26 = sphi 0, %s24
      %s27 = sphi 0, %s25
      %s28 = sphi 0, %s26
      %s29 = sphi 0, %s27
      %s37 = sphi 0, %s37
      %s39 = sphi 0, %s37
      %s40 = sphi 0, %s39
      %s54 = sphi 0, %s40
      %s64 = sphi 0, %s66
      %s67 = sphi 0, %s64
      %s68 = sphi 0, %s67
      %s84 = sphi 0, %s68
      %s88 = sphi 0, %s88
      %s90 = sphi 0, %s88
      %s91 = sphi 0, %s90
      %s105 = sphi 0, %s91
      %s115 = sphi 0, %s117
      %s118 = sphi 0, %s115
      %s119 = sphi 0, %s118
      %s135 = sphi 0, %s119
      %s141 = sphi 0, %s143
      %s144 = sphi 0, %s141
      %s145 = sphi 0, %s144
      %s161 = sphi 0, %s145
    $region4: #{tpu_custom_call.1} parent=1 // loop_header_branch
      %20 = sbr.rel (%p18) target = $region8
    $region5: #{tpu_custom_call.1} parent=1 // loop_body
      %s22 = ssub.s32 %s17, 1
      %s23 = ssub.s32 %s17, 2
      %s30 = sadd.s32 1, %s25
      %p31 = scmp.ge.s32.totalorder %s30, 4
      %s32 = scalar_select %p31, 0, %s30
      %s33 = sadd.s32 1, %s24
      %s34 = scalar_select %p31, %s33, %s24
      %p35 = scmp.ge.s32.totalorder %s34, 2
      %s36 = scalar_select %p35, 0, %s34
      %s38 = sadd.s32 %s37, 1
      %p41 = scmp.eq.s32.totalorder %s17, 7
      %p42 = scmp.ne.s32.totalorder %s37, %s39
      %p43 = scmp.eq.s32.totalorder %s17, 0
      %p44 = por %p42, %p43
      %p45 = scmp.ne.s32.totalorder %s37, %s39
      %p46 = scmp.eq.s32.totalorder %s22, 7
      %p47 = por %p45, %p46
      %p48 = scmp.ne.s32.totalorder %s39, %s40
      %p49 = scmp.eq.s32.totalorder %s22, 0
      %p50 = por %p48, %p49
      %p51 = scmp.ne.s32.totalorder %s39, %s40
      %p52 = scmp.eq.s32.totalorder %s23, 7
      %p53 = por %p51, %p52
      %p55 = scmp.ne.s32.totalorder %s40, %s54
      %p56 = scmp.eq.s32.totalorder %s23, 0
      %p57 = por %p55, %p56
      %s58 = smul.u32 %s24, 4
      %s59 = sadd.s32 %s58, %s25
      %s60 = smul.u32 %s36, 4
      %s61 = sadd.s32 %s60, %s32
      %s62 = ssub.s32 %s59, %s61
      %p63 = scmp.eq.s32.totalorder %s62, 0
      %s65 = sadd.s32 %s64, 1
      %s66 = scalar_select %p63, %s64, %s65
      %p69 = pneg %p63
      %p70 = scmp.eq.s32.totalorder %s17, 7
      %p71 = por %p69, %p70
      %p72 = scmp.ne.s32.totalorder %s64, %s67
      %p73 = scmp.eq.s32.totalorder %s17, 0
      %p74 = por %p72, %p73
      %p75 = scmp.ne.s32.totalorder %s64, %s67
      %p76 = scmp.eq.s32.totalorder %s22, 7
      %p77 = por %p75, %p76
      %p78 = scmp.ne.s32.totalorder %s67, %s68
      %p79 = scmp.eq.s32.totalorder %s22, 0
      %p80 = por %p78, %p79
      %p81 = scmp.ne.s32.totalorder %s67, %s68
      %p82 = scmp.eq.s32.totalorder %s23, 7
      %p83 = por %p81, %p82
      %p85 = scmp.ne.s32.totalorder %s68, %s84
      %p86 = scmp.eq.s32.totalorder %s23, 0
      %p87 = por %p85, %p86
      %s89 = sadd.s32 %s88, 1
      %p92 = scmp.eq.s32.totalorder %s17, 7
      %p93 = scmp.ne.s32.totalorder %s88, %s90
      %p94 = scmp.eq.s32.totalorder %s17, 0
      %p95 = por %p93, %p94
      %p96 = scmp.ne.s32.totalorder %s88, %s90
      %p97 = scmp.eq.s32.totalorder %s22, 7
      %p98 = por %p96, %p97
      %p99 = scmp.ne.s32.totalorder %s90, %s91
      %p100 = scmp.eq.s32.totalorder %s22, 0
      %p101 = por %p99, %p100
      %p102 = scmp.ne.s32.totalorder %s90, %s91
      %p103 = scmp.eq.s32.totalorder %s23, 7
      %p104 = por %p102, %p103
      %p106 = scmp.ne.s32.totalorder %s91, %s105
      %p107 = scmp.eq.s32.totalorder %s23, 0
      %p108 = por %p106, %p107
      %s109 = smul.u32 %s24, 4
      %s110 = sadd.s32 %s109, %s25
      %s111 = smul.u32 %s36, 4
      %s112 = sadd.s32 %s111, %s32
      %s113 = ssub.s32 %s110, %s112
      %p114 = scmp.eq.s32.totalorder %s113, 0
      %s116 = sadd.s32 %s115, 1
      %s117 = scalar_select %p114, %s115, %s116
      %p120 = pneg %p114
      %p121 = scmp.eq.s32.totalorder %s17, 7
      %p122 = por %p120, %p121
      %p123 = scmp.ne.s32.totalorder %s115, %s118
      %p124 = scmp.eq.s32.totalorder %s17, 0
      %p125 = por %p123, %p124
      %p126 = scmp.ne.s32.totalorder %s115, %s118
      %p127 = scmp.eq.s32.totalorder %s22, 7
      %p128 = por %p126, %p127
      %p129 = scmp.ne.s32.totalorder %s118, %s119
      %p130 = scmp.eq.s32.totalorder %s22, 0
      %p131 = por %p129, %p130
      %p132 = scmp.ne.s32.totalorder %s118, %s119
      %p133 = scmp.eq.s32.totalorder %s23, 7
      %p134 = por %p132, %p133
      %p136 = scmp.ne.s32.totalorder %s119, %s135
      %p137 = scmp.eq.s32.totalorder %s23, 0
      %p138 = por %p136, %p137
      %s139 = ssub.s32 %s24, %s36
      %p140 = scmp.eq.s32.totalorder %s139, 0
      %s142 = sadd.s32 %s141, 1
      %s143 = scalar_select %p140, %s141, %s142
      %p146 = pneg %p140
      %p147 = scmp.eq.s32.totalorder %s17, 7
      %p148 = por %p146, %p147
      %p149 = scmp.ne.s32.totalorder %s141, %s144
      %p150 = scmp.eq.s32.totalorder %s17, 0
      %p151 = por %p149, %p150
      %p152 = scmp.ne.s32.totalorder %s141, %s144
      %p153 = scmp.eq.s32.totalorder %s22, 7
      %p154 = por %p152, %p153
      %p155 = scmp.ne.s32.totalorder %s144, %s145
      %p156 = scmp.eq.s32.totalorder %s22, 0
      %p157 = por %p155, %p156
      %p158 = scmp.ne.s32.totalorder %s144, %s145
      %p159 = scmp.eq.s32.totalorder %s23, 7
      %p160 = por %p158, %p159
      %p162 = scmp.ne.s32.totalorder %s145, %s161
      %p163 = scmp.eq.s32.totalorder %s23, 0
      %p164 = por %p162, %p163
      %p165 = scmp.le.s32.totalorder 1, %s17
      %p166 = scmp.lt.s32.totalorder %s17, 9
      %p167 = pnand %p165, %p166
      %p168 = pneg %p167
      // Predicated region
      $region9: #{tpu_custom_call.1} parent=5 // pred_check
        _
      $region10: #{tpu_custom_call.1} parent=5 // pred_check_branch
        %170 = sbr.rel (%p167) target = $region12
      $region11: #{tpu_custom_call.1} parent=5 // pred_region
        %s171 = ssub.s32 %s17, 1
        // Predicated region
        $region13: #{tpu_custom_call.1} parent=11 // pred_check
          %p172 = pneg %p50
        $region14: #{tpu_custom_call.1} parent=11 // pred_check_branch
          %174 = sbr.rel (%p172) target = $region16
        $region15: #{tpu_custom_call.1} parent=11 // pred_region
          %s176 = ssub.s32 192, 192
          %177 = vsyncadd [#allocation4], %s176
          %s178 = sshll.u32 [#allocation3], 4
          %s179 = int_to_ptr.vmem [resolvable:$true] %s178
          %184 = dma.hbm_to_vmem [thread:$0]  %s0, 192, %s179, [#allocation4], 64, 64, 4
        $region16: #{tpu_custom_call.1} parent=11 // pred_fallthru
          _
        // Predicated region
        $region17: #{tpu_custom_call.1} parent=11 // pred_check
          %p185 = pneg %p101
        $region18: #{tpu_custom_call.1} parent=11 // pred_check_branch
          %187 = sbr.rel (%p185) target = $region20
        $region19: #{tpu_custom_call.1} parent=11 // pred_region
          _
        $region20: #{tpu_custom_call.1} parent=11 // pred_fallthru
          _
      $region12: #{tpu_custom_call.1} parent=5 // pred_fallthru
        _
      %p188 = scmp.lt.s32.totalorder %s17, 8
      // Predicated region
      $region21: #{tpu_custom_call.1} parent=5 // pred_check
        %p189 = pneg %p188
      $region22: #{tpu_custom_call.1} parent=5 // pred_check_branch
        %191 = sbr.rel (%p189) target = $region24
      $region23: #{tpu_custom_call.1} parent=5 // pred_region
        // Predicated region
        $region25: #{tpu_custom_call.1} parent=23 // pred_check
          %p192 = pneg %p74
        $region26: #{tpu_custom_call.1} parent=23 // pred_check_branch
          %194 = sbr.rel (%p192) target = $region28
        $region27: #{tpu_custom_call.1} parent=23 // pred_region
          %s195 = sand.u32 %s64, 1
          %s196 = scalar_lea.sflag [#allocation7], %s195
          %s197 = sand.u32 %s64, 1
          %s198 = smul.addr %s197, 24
          %s199 = scalar_lea.vmem [#allocation6], %s198
          %s200 = smul.u32 %s24, 4
          %s201 = sadd.s32 %s200, %s25
          %s203 = ssub.s32 384, 384
          %204 = vsyncadd %s196, %s203
          %s205 = smul.addr %s201, 64
          %s206 = scalar_lea.hbm %s1, %s205
          %s207 = sshll.u32 %s199, 4
          %s208 = int_to_ptr.vmem [resolvable:$true] %s207
          %213 = dma.hbm_to_vmem [thread:$0]  %s206, 384, %s208, %s196, 512, 64, 4
        $region28: #{tpu_custom_call.1} parent=23 // pred_fallthru
          _
        // Predicated region
        $region29: #{tpu_custom_call.1} parent=23 // pred_check
          %p214 = pneg %p125
        $region30: #{tpu_custom_call.1} parent=23 // pred_check_branch
          %216 = sbr.rel (%p214) target = $region32
        $region31: #{tpu_custom_call.1} parent=23 // pred_region
          %s217 = smul.u32 %s24, 4
          %s218 = sadd.s32 %s217, %s25
          %p219 = scmp.lt.s32.totalorder %s218, 7
          %s220 = scalar_select %p219, %s218, 7
          %s221 = scalar_lea.vmem %s3, %s220
          %s222 = smul.u32 %s24, 4
          %s223 = sadd.s32 %s222, %s25
        $region32: #{tpu_custom_call.1} parent=23 // pred_fallthru
          _
      $region24: #{tpu_custom_call.1} parent=5 // pred_fallthru
        _
      %p224 = scmp.le.s32.totalorder 1, %s17
      %p225 = scmp.lt.s32.totalorder %s17, 9
      %p226 = pnand %p224, %p225
      %p227 = pneg %p226
      // Predicated region
      $region33: #{tpu_custom_call.1} parent=5 // pred_check
        _
      $region34: #{tpu_custom_call.1} parent=5 // pred_check_branch
        %229 = sbr.rel (%p226) target = $region36
      $region35: #{tpu_custom_call.1} parent=5 // pred_region
        %s230 = ssub.s32 %s17, 1
        // Predicated region
        $region37: #{tpu_custom_call.1} parent=35 // pred_check
          %p231 = pneg %p50
        $region38: #{tpu_custom_call.1} parent=35 // pred_check_branch
          %233 = sbr.rel (%p231) target = $region40
        $region39: #{tpu_custom_call.1} parent=35 // pred_region
          %234 = dma.done [#allocation4], 192
        $region40: #{tpu_custom_call.1} parent=35 // pred_fallthru
          _
        %s235 = sand.u32 %s67, 1
        %s236 = scalar_lea.sflag [#allocation7], %s235
        %s237 = sand.u32 %s67, 1
        %s238 = smul.addr %s237, 24
        %s239 = scalar_lea.vmem [#allocation6], %s238
        // Predicated region
        $region41: #{tpu_custom_call.1} parent=35 // pred_check
          %p240 = pneg %p80
        $region42: #{tpu_custom_call.1} parent=35 // pred_check_branch
          %242 = sbr.rel (%p240) target = $region44
        $region43: #{tpu_custom_call.1} parent=35 // pred_region
          %243 = dma.done %s236, 384
        $region44: #{tpu_custom_call.1} parent=35 // pred_fallthru
          _
        %p244 = pneg %p50
        %p245 = pneg %p47
        %s246 = sand.u32 %s67, 1
        %s247 = scalar_lea.sflag [#allocation7], %s246
        %s248 = sand.u32 %s67, 1
        %s249 = smul.addr %s248, 24
        %s250 = scalar_lea.vmem [#allocation6], %s249
        %p251 = pneg %p80
        %p252 = pneg %p77
        %p253 = pneg %p101
        %p254 = pneg %p98
        %s255 = smul.u32 %s26, 4
        %s256 = sadd.s32 %s255, %s27
        %p257 = scmp.lt.s32.totalorder %s256, 7
        %s258 = scalar_select %p257, %s256, 7
        %s259 = scalar_lea.vmem %s3, %s258
        %p260 = pneg %p131
        %p261 = pneg %p128
        %p262 = pneg %p157
        %p263 = pneg %p154
        %s264 = sand.u32 %s144, 1
        %s265 = scalar_lea.sflag [#allocation5], %s264
        %s266 = sand.u32 %s144, 1
        %s267 = smul.addr %s266, 8
        %s268 = scalar_lea.vmem [#allocation8], %s267
        %s269 = smul.u32 %s26, 4
        %s270 = sadd.s32 %s269, %s27
        %s271 = smul.u32 %s26, 4
        %s272 = sadd.s32 %s271, %s27
        %p273 = scmp.lt.s32.totalorder %s272, 7
        %s274 = scalar_select %p273, %s272, 7
        %s275 = scalar_lea.vmem %s3, %s274
        %s276 = smul.u32 %s26, 4
        %s277 = sadd.s32 %s276, %s27
        %p279 = scmp.eq.s32.totalorder %s27, 0
        // Predicated region
        $region45: #{tpu_custom_call.1} parent=35 // pred_check
          %p280 = pneg %p279
        $region46: #{tpu_custom_call.1} parent=35 // pred_check_branch
          %282 = sbr.rel (%p280) target = $region48
        $region47: #{tpu_custom_call.1} parent=35 // pred_region
          %v283 = vlaneseq
          %v284 = vand.u32 %v283, 127
          %vm285 = vcmp.eq.s32.totalorder %v284, 0
          %vm286 = vcmp.eq.s32.totalorder %v284, 3
          %vm287 = vmor %vm285, %vm286
          %v288 = vsel %vm287, -inf, 0.0
          %vm289 = vcmask 64512
          %290 = vst.msk [vmem:[#allocation2] sm:$0xff] %vm289, %v288
        $region48: #{tpu_custom_call.1} parent=35 // pred_fallthru
          _
        %v291 = vld [vmem:[#allocation3] sm:$0xf]
        %v292 = vld [vmem:[#allocation3 + $0x4] sm:$0xf]
        %v293 = vld [vmem:[#allocation3 + $0x8] sm:$0xf]
        %v294 = vld [vmem:[%s239] sm:$0xf]
        %v295 = vld [vmem:[%s239 + $0x4] sm:$0xf]
        %v296 = vld [vmem:[%s239 + $0x8] sm:$0xf]
        %v297 = vld [vmem:[%s239 + $0xc] sm:$0xf]
        %v298 = vld [vmem:[%s239 + $0x10] sm:$0xf]
        %v299 = vld [vmem:[%s239 + $0x14] sm:$0xf]
        %v303 = vunpack.c.l.b16 %v291
        %v304 = vunpack.c.l.b16 %v292
        %v305 = vunpack.c.l.b16 %v293
        %v306 = vpack.c.b16 %v304, %v303
        %v307 = vpack.c.b16 %v305, %v305
        %v314 = vunpack.c.l.b16 %v294
        %v315 = vunpack.c.l.b16 %v295
        %v316 = vunpack.c.l.b16 %v296
        %v317 = vunpack.c.l.b16 %v297
        %v318 = vunpack.c.l.b16 %v298
        %v319 = vunpack.c.l.b16 %v299
        %v320 = vpack.c.b16 %v315, %v314
        %v321 = vpack.c.b16 %v317, %v316
        %v322 = vpack.c.b16 %v319, %v318
        %vm326 = vcmask 392192
        %v328 = vsel %vm326, %v306, 0
        %v331 = vsel %vm326, %v307, 0
        %333 = vmatprep.subr.bf16.mxu0 0
        %334 = vmatpush1.bf16.msra.mxu0 0
        %335 = vmatprep.subr.bf16.mxu0 0
        %336 = vmatpush1.bf16.msra.mxu0 0
        %337 = vmatprep.subr.bf16.mxu0 0
        %338 = vmatpush1.bf16.msra.mxu0 0
        %339 = vmatprep.subr.bf16.mxu0 0
        %340 = vmatpush1.bf16.msra.mxu0 0
        %341 = vmatprep.subr.bf16.mxu0 0
        %342 = vmatpush1.bf16.msra.mxu0 0
        %343 = vmatprep.subr.bf16.mxu0 0
        %344 = vmatpush1.bf16.msra.mxu0 %v322
        %345 = vmatprep.subr.bf16.mxu0 0
        %346 = vmatpush1.bf16.msra.mxu0 %v321
        %347 = vmatprep.subr.bf16.mxu0 0
        %348 = vmatpush1.bf16.msra.mxu0 %v320
        %349 = vmatprep.subr.bf16.mxu0 0
        %350 = vmatpush2.bf16.msra.mxu0 0
        %351 = vmatprep.subr.bf16.mxu0 0
        %352 = vmatpush2.bf16.msra.mxu0 0
        %353 = vmatprep.subr.bf16.mxu0 0
        %354 = vmatpush2.bf16.msra.mxu0 0
        %355 = vmatprep.subr.bf16.mxu0 0
        %356 = vmatpush2.bf16.msra.mxu0 0
        %357 = vmatprep.subr.bf16.mxu0 0
        %358 = vmatpush2.bf16.msra.mxu0 0
        %359 = vmatprep.subr.bf16.mxu0 0
        %360 = vmatpush2.bf16.msra.mxu0 0
        %361 = vmatprep.subr.bf16.mxu0 0
        %362 = vmatpush2.bf16.msra.mxu0 0
        %363 = vmatprep.subr.bf16.mxu0 0
        %364 = vmatpush2.bf16.msra.mxu0 0
        %365 = vmatprep.mubr.bf16.mxu0 0
        %366 = vmatmul.mubr.bf16.gmra.mxu0 %v328
        %v367 = vpop.f32.mrf.mxu0
        %v368 = vadd.f32 0.0, %v367
        %v369 = vpop.f32.mrf.mxu0
        %v370 = vpop.f32.mrf.mxu0
        %v371 = vadd.f32 0.0, %v370
        %v372 = vpop.f32.mrf.mxu0
        %373 = vmatprep.mubr.bf16.mxu0 0
        %374 = vmatmul.mubr.bf16.gmra.mxu0 %v331
        %v375 = vpop.f32.mrf.mxu0
        %v376 = vadd.f32 0.0, %v375
        %v377 = vpop.f32.mrf.mxu0
        %v378 = vpop.f32.mrf.mxu0
        %v379 = vpop.f32.mrf.mxu0
        %380 = vdwg.mxu0
        %v381 = vld [vmem:[%s275] sm:$0x1]
        %v382 = vld [vmem:[%s2] sm:$0xff]
        %v383 = vlaneseq
        %v384 = vshrl.u32 %v383, 7
        %v385 = vsub.s32 0, %v384
        %v386 = vrot.slane %v381, %v385
        %387 = vset.pattern.permute.xlu0 0
        %388 = vperm.xlu0 %387, %v382
        %v389 = vpop.permute.xlu0 %388
        %vm390 = vcmp.eq.s32.totalorder %v386, %v389
        %v391 = vadd.f32 %v371, 1.0
        %v392 = vsel %vm390, %v391, 0.0
        %v393 = vld [vmem:[#allocation2] sm:$0xff]
        %v394 = vmul.f32 %v392, %v368
        %395 = vadd.xlane.f32.xlu0 %v394
        %v396 = vpop.xlane.xlu0 %395
        %v397 = vadd.f32 %v393, %v396
        %398 = vmax.xlane.f32.xlu0 %v368
        %v399 = vpop.xlane.xlu0 %398
        %v400 = vmax.f32 %v393, %v399
        %v401 = vsub.f32 %v393, %v400
        %v402 = vmul.f32 %v401, 1.442695
        %v403 = vpow.pop %v402
        %405 = vrot.lane.b32.xlu0 %v403, 1
        %v406 = vpop.permute.xlu0 %405
        %v408 = vmul.f32 %v393, %v406
        %410 = vset.pattern.permute.xlu0 0
        %411 = vperm.xlu0 %410, %v400
        %v412 = vpop.permute.xlu0 %411
        %v414 = vsub.f32 %v368, %v412
        %v415 = vmul.f32 %v414, 1.442695
        %v416 = vpow.pop %v415
        %417 = vadd.xlane.f32.xlu0 %v416
        %v418 = vpop.xlane.xlu0 %417
        %v419 = vadd.f32 %v408, %v418
        %v420 = vmul.f32 %v392, %v376
        %421 = vadd.xlane.f32.xlu0 %v420
        %v422 = vpop.xlane.xlu0 %421
        %v423 = vadd.f32 %v393, %v422
        %424 = vmax.xlane.f32.xlu0 %v376
        %v425 = vpop.xlane.xlu0 %424
        %v426 = vmax.f32 %v393, %v425
        %v427 = vsub.f32 %v393, %v426
        %v428 = vmul.f32 %v427, 1.442695
        %v429 = vpow.pop %v428
        %431 = vrot.lane.b32.xlu0 %v429, 1
        %v432 = vpop.permute.xlu0 %431
        %v434 = vmul.f32 %v393, %v432
        %436 = vset.pattern.permute.xlu0 3
        %437 = vperm.xlu0 %436, %v426
        %v438 = vpop.permute.xlu0 %437
        %v440 = vsub.f32 %v376, %v438
        %v441 = vmul.f32 %v440, 1.442695
        %v442 = vpow.pop %v441
        %443 = vadd.xlane.f32.xlu0 %v442
        %v444 = vpop.xlane.xlu0 %443
        %v445 = vadd.f32 %v434, %v444
        %446 = vadd.xlane.f32.xlu0 %v392
        %v447 = vpop.xlane.xlu0 %446
        %v448 = vadd.f32 %v393, %v447
        %v449 = vsel %vm390, 1, 0
        %v450 = vcvt.s32.f32 %v449
        %451 = vadd.xlane.f32.xlu0 %v450
        %v452 = vpop.xlane.xlu0 %451
        %v453 = vadd.f32 %v393, %v452
        %vm454 = vcmask 7168
        %455 = vst.msk [vmem:[#allocation2] sm:$0xff] %vm454, %v400
        %vm456 = vcmask 15368
        %457 = vst.msk [vmem:[#allocation2] sm:$0xff] %vm456, %v419
        %vm458 = vcmask 23568
        %459 = vst.msk [vmem:[#allocation2] sm:$0xff] %vm458, %v397
        %vm460 = vcmask 31768
        %461 = vst.msk [vmem:[#allocation2] sm:$0xff] %vm460, %v426
        %vm462 = vcmask 39968
        %463 = vst.msk [vmem:[#allocation2] sm:$0xff] %vm462, %v445
        %vm464 = vcmask 48168
        %465 = vst.msk [vmem:[#allocation2] sm:$0xff] %vm464, %v423
        %vm466 = vcmask 56368
        %467 = vst.msk [vmem:[#allocation2] sm:$0xff] %vm466, %v448
        %vm468 = vcmask 64568
        %469 = vst.msk [vmem:[#allocation2] sm:$0xff] %vm468, %v453
        %p470 = scmp.eq.s32.totalorder %s27, 3
        // Predicated region
        $region49: #{tpu_custom_call.1} parent=35 // pred_check
          %p471 = pneg %p470
        $region50: #{tpu_custom_call.1} parent=35 // pred_check_branch
          %473 = sbr.rel (%p471) target = $region52
        $region51: #{tpu_custom_call.1} parent=35 // pred_region
          %v474 = vld [vmem:[#allocation2] sm:$0xff]
          %vm475 = vcmask 64512
          %476 = vst.msk [vmem:[%s268] sm:$0xff] %vm475, %v474
        $region52: #{tpu_custom_call.1} parent=35 // pred_fallthru
          _
        %s477 = sand.u32 %s144, 1
        %s478 = scalar_lea.sflag [#allocation5], %s477
        %s479 = sand.u32 %s144, 1
        %s480 = smul.addr %s479, 8
        %s481 = scalar_lea.vmem [#allocation8], %s480
        // Predicated region
        $region53: #{tpu_custom_call.1} parent=35 // pred_check
          %p482 = pneg %p154
        $region54: #{tpu_custom_call.1} parent=35 // pred_check_branch
          %484 = sbr.rel (%p482) target = $region56
        $region55: #{tpu_custom_call.1} parent=35 // pred_region
          %s486 = ssub.s32 128, 128
          %487 = vsyncadd %s478, %s486
          %s488 = smul.addr %s26, 128
          %s489 = scalar_lea.hbm %s4, %s488
          %s491 = sshll.u32 %s481, 4
          %s492 = int_to_ptr.vmem [resolvable:$true] %s491
          %494 = dma.vmem_to_hbm [thread:$0]  %s492, 128, %s489, %s478
        $region56: #{tpu_custom_call.1} parent=35 // pred_fallthru
          _
      $region36: #{tpu_custom_call.1} parent=5 // pred_fallthru
        _
      %p495 = scmp.le.s32.totalorder 2, %s17
      // Predicated region
      $region57: #{tpu_custom_call.1} parent=5 // pred_check
        %p496 = pneg %p495
      $region58: #{tpu_custom_call.1} parent=5 // pred_check_branch
        %498 = sbr.rel (%p496) target = $region60
      $region59: #{tpu_custom_call.1} parent=5 // pred_region
        %s499 = ssub.s32 %s17, 2
        // Predicated region
        $region61: #{tpu_custom_call.1} parent=59 // pred_check
          %p500 = pneg %p160
        $region62: #{tpu_custom_call.1} parent=59 // pred_check_branch
          %502 = sbr.rel (%p500) target = $region64
        $region63: #{tpu_custom_call.1} parent=59 // pred_region
          %s503 = sand.u32 %s145, 1
          %s504 = scalar_lea.sflag [#allocation5], %s503
          %s505 = sand.u32 %s145, 1
          %s506 = smul.addr %s505, 8
          %s507 = scalar_lea.vmem [#allocation8], %s506
          %508 = dma.done %s504, 128
        $region64: #{tpu_custom_call.1} parent=59 // pred_fallthru
          _
      $region60: #{tpu_custom_call.1} parent=5 // pred_fallthru
        _
    $region6: #{tpu_custom_call.1} parent=1 // loop_footer
      %s21 = sadd.s32 1, %s17
    $region7: #{tpu_custom_call.1} parent=1 // loop_footer_branch
      %16 = sbr.rel target = $region3
    $region8: #{tpu_custom_call.1} parent=1 // loop_exit
      _
    %509 = vsyncpa [#allocation4], 1
    %s510 = scalar_lea.sflag [#allocation4], 1
    %511 = vsyncpa %s510, 1
    %512 = vsyncpa [#allocation7], 1
    %s513 = scalar_lea.sflag [#allocation7], 1
    %514 = vsyncpa %s513, 1
    %515 = vsyncpa [#allocation5], 1
    %s516 = scalar_lea.sflag [#allocation5], 1
    %517 = vsyncpa %s516, 1

</llo_original>
